<compile_context>
chip_gen: v7x
topology: tpu7x:2x2x1
jax: 0.10.0
libtpu: 0.0.40
codegen_flags: <defaults>
</compile_context>

<pallas_src>
import jax
import jax.numpy as jnp
from jax.experimental import pallas as pl
from jax.experimental.pallas import tpu as pltpu

_MIB = 1024 * 1024


def _rep_manip_flat_kernel(x_ref, mod_ref, bias_ref, o_ref):
    """Lane-dense path. x_ref: (TB, D); mod/bias_ref: (1, (T-1)*D); o_ref: (TB, T*D)."""
    d = x_ref.shape[1]
    tm1 = mod_ref.shape[1] // d

    # Main-task passthrough: lanes [0, D).
    o_ref[:, 0:d] = x_ref[...].astype(o_ref.dtype)

    # Modulated tasks, one 128-aligned D-chunk at a time (unmasked stores).
    # Loads are kept inside each store expression (no long-lived full-tile value).
    for t in range(tm1):
        lo = (t + 1) * d
        gate = jax.nn.sigmoid(mod_ref[:, t * d:(t + 1) * d])      # (1, D) on EUP
        o_ref[:, lo:lo + d] = (gate * x_ref[...]
                               + bias_ref[:, t * d:(t + 1) * d]).astype(o_ref.dtype)


def _rep_manip_3d_kernel(x_ref, mod_ref, bias_ref, o_ref):
    """Fallback path (D not a multiple of 128). o_ref: (TB, T, D).

    Per-task stores; no (TB, T-1, D) broadcast temporary.  Note: a non-128 D
    (e.g. the module default 100) pays masked lane stores -- pad D to 128
    upstream if this is the production width.
    """
    tm1 = mod_ref.shape[0]
    o_ref[:, 0, :] = x_ref[...].astype(o_ref.dtype)
    for t in range(tm1):
        gate = jax.nn.sigmoid(mod_ref[t:t + 1, :])                 # (1, D)
        o_ref[:, t + 1, :] = (gate * x_ref[...]
                              + bias_ref[t:t + 1, :]).astype(o_ref.dtype)


def _vmem_capacity_bytes():
    try:
        return int(pltpu.get_tpu_info().vmem_capacity_bytes)
    except Exception:
        return 64 * _MIB   # conservative (v7x-sized) default


def representation_manipulator(x, modulators, bias, *, block_batch=None):
    """x: (B, D); modulators/bias: (N_tasks-1, D)  ->  (B, N_tasks, D)."""
    B, D = x.shape
    tm1, d2 = modulators.shape
    assert d2 == D and bias.shape == (tm1, D)
    n_tasks = tm1 + 1
    itemsize = jnp.dtype(x.dtype).itemsize

    vmem_cap = _vmem_capacity_bytes()
    sub = max(8, 32 // itemsize)               # sublane packing multiple per dtype

    if block_batch is None:
        # ~16 MiB output tile (capped at 1/4 of physical VMEM so double-buffered
        # in+out tiles leave headroom on every generation).
        target_out_tile_bytes = min(16 * _MIB, vmem_cap // 4)
        rows = max(1, target_out_tile_bytes // (n_tasks * D * itemsize))
        tb = min(B, rows)
        # Grid-aware cap: keep at least 2 tiles when the batch permits so the
        # v7x megacore uses both TensorCores and the pipeline overlaps the input
        # read under the T x larger output writeback.
        if B >= 2 * sub:
            n_tiles = max(2, pl.cdiv(B, tb))
            if n_tiles % 2:
                n_tiles += 1
            tb = min(tb, pl.cdiv(B, n_tiles))
        # Align to the sublane packing multiple (8 f32 / 16 bf16 / 32 int8).
        if B >= sub:
            tb = max(sub, (tb // sub) * sub)
        block_batch = min(tb, B)
        # TODO(synk): for very large n_tasks*D, add a second "parallel" grid axis
        # over 128-multiple chunks of the task*feature lane axis so TB never has
        # to shrink below the sublane multiple.
    TB = int(block_batch)
    grid = (pl.cdiv(B, TB),)

    # Double-buffered input+output tiles + resident params, with headroom.
    needed = 2 * TB * (n_tasks + 1) * D * itemsize + 2 * tm1 * D * itemsize
    vmem_limit = max(32 * _MIB, 2 * needed)
    vmem_limit = min(vmem_limit, (vmem_cap * 3) // 4)
    # Never under-provision an explicit (large) block_batch; stay under physical.
    vmem_limit = int(min(max(vmem_limit, needed + needed // 4), (vmem_cap * 9) // 10))

    cp = pltpu.CompilerParams(
        dimension_semantics=("parallel",),     # batch tiles are independent
        vmem_limit_bytes=vmem_limit,
    )
    cost = pl.CostEstimate(
        flops=2 * B * tm1 * D,
        transcendentals=grid[0] * tm1 * D,     # sigmoid recomputed per batch tile
        bytes_accessed=(B * D + B * n_tasks * D + 2 * tm1 * D) * itemsize,
    )

    if D % 128 == 0:
        # Lane-dense output: last axis is n_tasks*D (multiple of 128).
        mod_flat = modulators.reshape(1, tm1 * D)
        bias_flat = bias.reshape(1, tm1 * D)
        out_flat = pl.pallas_call(
            _rep_manip_flat_kernel,
            out_shape=jax.ShapeDtypeStruct((B, n_tasks * D), x.dtype),
            grid=grid,
            in_specs=[
                pl.BlockSpec((TB, D), lambda i: (i, 0)),
                pl.BlockSpec((1, tm1 * D), lambda i: (0, 0)),   # resident params
                pl.BlockSpec((1, tm1 * D), lambda i: (0, 0)),
            ],
            out_specs=pl.BlockSpec((TB, n_tasks * D), lambda i: (i, 0)),
            compiler_params=cp,
            cost_estimate=cost,
        )(x, mod_flat, bias_flat)
        return out_flat.reshape(B, n_tasks, D)   # row-major reshape: no data movement

    # Fallback for arbitrary D (e.g. the module default D=100).
    return pl.pallas_call(
        _rep_manip_3d_kernel,
        out_shape=jax.ShapeDtypeStruct((B, n_tasks, D), x.dtype),
        grid=grid,
        in_specs=[
            pl.BlockSpec((TB, D), lambda i: (i, 0)),
            pl.BlockSpec((tm1, D), lambda i: (0, 0)),
            pl.BlockSpec((tm1, D), lambda i: (0, 0)),
        ],
        out_specs=pl.BlockSpec((TB, n_tasks, D), lambda i: (i, 0, 0)),
        compiler_params=cp,
        cost_estimate=cost,
    )(x, modulators, bias)


def representation_manipulator_ref(x, modulators, bias):
    """Pure-JAX reference matching the PyTorch forward exactly."""
    gate = jax.nn.sigmoid(modulators)[None, :, :]            # (1, T-1, D)
    modulated = gate * x[:, None, :] + bias[None, :, :]      # (B, T-1, D)
    return jnp.concatenate([x[:, None, :], modulated], axis=1)


if __name__ == "__main__":
    key = jax.random.PRNGKey(0)
    kx, km, kb = jax.random.split(key, 3)

    n_tasks = 10
    batch = 16

    # Case 1: lane-dense path (D multiple of 128); auto-sizing -> 2 grid tiles.
    D = 128
    x = jax.random.normal(kx, (batch, D), dtype=jnp.float32)
    mod = jax.random.uniform(km, (n_tasks - 1, D), dtype=jnp.float32,
                             minval=-1.0, maxval=1.0)
    bias = jax.random.uniform(kb, (n_tasks - 1, D), dtype=jnp.float32,
                              minval=-1.0, maxval=1.0)
    out = jax.block_until_ready(representation_manipulator(x, mod, bias))
    ref = representation_manipulator_ref(x, mod, bias)
    assert out.shape == (batch, n_tasks, D)
    assert jnp.allclose(out, ref, atol=1e-5, rtol=1e-5)

    # Case 2: module-default feature width (D=100) -> 3-D fallback path.
    D2 = 100
    x2 = jax.random.normal(kx, (batch, D2), dtype=jnp.float32)
    mod2 = jax.random.uniform(km, (n_tasks - 1, D2), dtype=jnp.float32,
                              minval=-1.0, maxval=1.0)
    bias2 = jax.random.uniform(kb, (n_tasks - 1, D2), dtype=jnp.float32,
                               minval=-1.0, maxval=1.0)
    out2 = jax.block_until_ready(representation_manipulator(x2, mod2, bias2))
    ref2 = representation_manipulator_ref(x2, mod2, bias2)
    assert out2.shape == (batch, n_tasks, D2)
    assert jnp.allclose(out2, ref2, atol=1e-5, rtol=1e-5)

    print("KERNEL_OK")
</pallas_src>

<mosaic_0001>
module attributes {stable_mosaic.version = 11 : i64} {
  func.func @_rep_manip_flat_kernel(%arg0: i32, %arg1: memref<8x128xf32, #tpu.memory_space<vmem>>, %arg2: memref<1x1152xf32, #tpu.memory_space<vmem>>, %arg3: memref<1x1152xf32, #tpu.memory_space<vmem>>, %arg4: memref<8x1280xf32, #tpu.memory_space<vmem>>) attributes {dimension_semantics = [#tpu.dimension_semantics<parallel>], iteration_bounds = array<i64: 2>, scalar_prefetch = 0 : i64, scratch_operands = 0 : i64, tpu.core_type = #tpu.core_type<tc>, window_params = [{transform_indices = @transform_0, window_bounds = array<i64: 8, 128>}, {pipeline_mode = #tpu.pipeline_mode<synchronous>, transform_indices = @transform_1, window_bounds = array<i64: 1, 1152>}, {pipeline_mode = #tpu.pipeline_mode<synchronous>, transform_indices = @transform_2, window_bounds = array<i64: 1, 1152>}, {transform_indices = @transform_3, window_bounds = array<i64: 8, 1280>}]} {
    %c0 = arith.constant 0 : index
    %c0_0 = arith.constant 0 : index
    %0 = vector.load %arg1[%c0, %c0_0] : memref<8x128xf32, #tpu.memory_space<vmem>>, vector<8x128xf32>
    %c0_1 = arith.constant 0 : index
    %c0_2 = arith.constant 0 : index
    %1 = vector.load %arg4[%c0_1, %c0_2] : memref<8x1280xf32, #tpu.memory_space<vmem>>, vector<8x128xf32>
    tpu.vector_store %arg4[%c0_1, %c0_2], %0 {strides = array<i32>} : memref<8x1280xf32, #tpu.memory_space<vmem>>, vector<8x128xf32>,
    %c0_3 = arith.constant 0 : index
    %c0_4 = arith.constant 0 : index
    %2 = vector.load %arg2[%c0_3, %c0_4] : memref<1x1152xf32, #tpu.memory_space<vmem>>, vector<1x128xf32>
    %3 = arith.negf %2 : vector<1x128xf32>
    %4 = math.exp %3 : vector<1x128xf32>
    %cst = arith.constant 1.000000e+00 : f32
    %5 = vector.broadcast %cst : f32 to vector<1x128xf32>
    %6 = arith.addf %5, %4 : vector<1x128xf32>
    %7 = arith.divf %5, %6 : vector<1x128xf32>
    %c0_5 = arith.constant 0 : index
    %c0_6 = arith.constant 0 : index
    %8 = vector.load %arg1[%c0_5, %c0_6] : memref<8x128xf32, #tpu.memory_space<vmem>>, vector<8x128xf32>
    %9 = vector.broadcast %7 : vector<1x128xf32> to vector<8x128xf32>
    %10 = arith.mulf %9, %8 : vector<8x128xf32>
    %c0_7 = arith.constant 0 : index
    %c0_8 = arith.constant 0 : index
    %11 = vector.load %arg3[%c0_7, %c0_8] : memref<1x1152xf32, #tpu.memory_space<vmem>>, vector<1x128xf32>
    %12 = vector.broadcast %11 : vector<1x128xf32> to vector<8x128xf32>
    %13 = arith.addf %10, %12 : vector<8x128xf32>
    %c0_9 = arith.constant 0 : index
    %c128 = arith.constant 128 : index
    %14 = vector.load %arg4[%c0_9, %c128] : memref<8x1280xf32, #tpu.memory_space<vmem>>, vector<8x128xf32>
    tpu.vector_store %arg4[%c0_9, %c128], %13 {strides = array<i32>} : memref<8x1280xf32, #tpu.memory_space<vmem>>, vector<8x128xf32>,
    %c0_10 = arith.constant 0 : index
    %c128_11 = arith.constant 128 : index
    %15 = vector.load %arg2[%c0_10, %c128_11] : memref<1x1152xf32, #tpu.memory_space<vmem>>, vector<1x128xf32>
    %16 = arith.negf %15 : vector<1x128xf32>
    %17 = math.exp %16 : vector<1x128xf32>
    %cst_12 = arith.constant 1.000000e+00 : f32
    %18 = vector.broadcast %cst_12 : f32 to vector<1x128xf32>
    %19 = arith.addf %18, %17 : vector<1x128xf32>
    %20 = arith.divf %18, %19 : vector<1x128xf32>
    %c0_13 = arith.constant 0 : index
    %c0_14 = arith.constant 0 : index
    %21 = vector.load %arg1[%c0_13, %c0_14] : memref<8x128xf32, #tpu.memory_space<vmem>>, vector<8x128xf32>
    %22 = vector.broadcast %20 : vector<1x128xf32> to vector<8x128xf32>
    %23 = arith.mulf %22, %21 : vector<8x128xf32>
    %c0_15 = arith.constant 0 : index
    %c128_16 = arith.constant 128 : index
    %24 = vector.load %arg3[%c0_15, %c128_16] : memref<1x1152xf32, #tpu.memory_space<vmem>>, vector<1x128xf32>
    %25 = vector.broadcast %24 : vector<1x128xf32> to vector<8x128xf32>
    %26 = arith.addf %23, %25 : vector<8x128xf32>
    %c0_17 = arith.constant 0 : index
    %c256 = arith.constant 256 : index
    %27 = vector.load %arg4[%c0_17, %c256] : memref<8x1280xf32, #tpu.memory_space<vmem>>, vector<8x128xf32>
    tpu.vector_store %arg4[%c0_17, %c256], %26 {strides = array<i32>} : memref<8x1280xf32, #tpu.memory_space<vmem>>, vector<8x128xf32>,
    %c0_18 = arith.constant 0 : index
    %c256_19 = arith.constant 256 : index
    %28 = vector.load %arg2[%c0_18, %c256_19] : memref<1x1152xf32, #tpu.memory_space<vmem>>, vector<1x128xf32>
    %29 = arith.negf %28 : vector<1x128xf32>
    %30 = math.exp %29 : vector<1x128xf32>
    %cst_20 = arith.constant 1.000000e+00 : f32
    %31 = vector.broadcast %cst_20 : f32 to vector<1x128xf32>
    %32 = arith.addf %31, %30 : vector<1x128xf32>
    %33 = arith.divf %31, %32 : vector<1x128xf32>
    %c0_21 = arith.constant 0 : index
    %c0_22 = arith.constant 0 : index
    %34 = vector.load %arg1[%c0_21, %c0_22] : memref<8x128xf32, #tpu.memory_space<vmem>>, vector<8x128xf32>
    %35 = vector.broadcast %33 : vector<1x128xf32> to vector<8x128xf32>
    %36 = arith.mulf %35, %34 : vector<8x128xf32>
    %c0_23 = arith.constant 0 : index
    %c256_24 = arith.constant 256 : index
    %37 = vector.load %arg3[%c0_23, %c256_24] : memref<1x1152xf32, #tpu.memory_space<vmem>>, vector<1x128xf32>
    %38 = vector.broadcast %37 : vector<1x128xf32> to vector<8x128xf32>
    %39 = arith.addf %36, %38 : vector<8x128xf32>
    %c0_25 = arith.constant 0 : index
    %c384 = arith.constant 384 : index
    %40 = vector.load %arg4[%c0_25, %c384] : memref<8x1280xf32, #tpu.memory_space<vmem>>, vector<8x128xf32>
    tpu.vector_store %arg4[%c0_25, %c384], %39 {strides = array<i32>} : memref<8x1280xf32, #tpu.memory_space<vmem>>, vector<8x128xf32>,
    %c0_26 = arith.constant 0 : index
    %c384_27 = arith.constant 384 : index
    %41 = vector.load %arg2[%c0_26, %c384_27] : memref<1x1152xf32, #tpu.memory_space<vmem>>, vector<1x128xf32>
    %42 = arith.negf %41 : vector<1x128xf32>
    %43 = math.exp %42 : vector<1x128xf32>
    %cst_28 = arith.constant 1.000000e+00 : f32
    %44 = vector.broadcast %cst_28 : f32 to vector<1x128xf32>
    %45 = arith.addf %44, %43 : vector<1x128xf32>
    %46 = arith.divf %44, %45 : vector<1x128xf32>
    %c0_29 = arith.constant 0 : index
    %c0_30 = arith.constant 0 : index
    %47 = vector.load %arg1[%c0_29, %c0_30] : memref<8x128xf32, #tpu.memory_space<vmem>>, vector<8x128xf32>
    %48 = vector.broadcast %46 : vector<1x128xf32> to vector<8x128xf32>
    %49 = arith.mulf %48, %47 : vector<8x128xf32>
    %c0_31 = arith.constant 0 : index
    %c384_32 = arith.constant 384 : index
    %50 = vector.load %arg3[%c0_31, %c384_32] : memref<1x1152xf32, #tpu.memory_space<vmem>>, vector<1x128xf32>
    %51 = vector.broadcast %50 : vector<1x128xf32> to vector<8x128xf32>
    %52 = arith.addf %49, %51 : vector<8x128xf32>
    %c0_33 = arith.constant 0 : index
    %c512 = arith.constant 512 : index
    %53 = vector.load %arg4[%c0_33, %c512] : memref<8x1280xf32, #tpu.memory_space<vmem>>, vector<8x128xf32>
    tpu.vector_store %arg4[%c0_33, %c512], %52 {strides = array<i32>} : memref<8x1280xf32, #tpu.memory_space<vmem>>, vector<8x128xf32>,
    %c0_34 = arith.constant 0 : index
    %c512_35 = arith.constant 512 : index
    %54 = vector.load %arg2[%c0_34, %c512_35] : memref<1x1152xf32, #tpu.memory_space<vmem>>, vector<1x128xf32>
    %55 = arith.negf %54 : vector<1x128xf32>
    %56 = math.exp %55 : vector<1x128xf32>
    %cst_36 = arith.constant 1.000000e+00 : f32
    %57 = vector.broadcast %cst_36 : f32 to vector<1x128xf32>
    %58 = arith.addf %57, %56 : vector<1x128xf32>
    %59 = arith.divf %57, %58 : vector<1x128xf32>
    %c0_37 = arith.constant 0 : index
    %c0_38 = arith.constant 0 : index
    %60 = vector.load %arg1[%c0_37, %c0_38] : memref<8x128xf32, #tpu.memory_space<vmem>>, vector<8x128xf32>
    %61 = vector.broadcast %59 : vector<1x128xf32> to vector<8x128xf32>
    %62 = arith.mulf %61, %60 : vector<8x128xf32>
    %c0_39 = arith.constant 0 : index
    %c512_40 = arith.constant 512 : index
    %63 = vector.load %arg3[%c0_39, %c512_40] : memref<1x1152xf32, #tpu.memory_space<vmem>>, vector<1x128xf32>
    %64 = vector.broadcast %63 : vector<1x128xf32> to vector<8x128xf32>
    %65 = arith.addf %62, %64 : vector<8x128xf32>
    %c0_41 = arith.constant 0 : index
    %c640 = arith.constant 640 : index
    %66 = vector.load %arg4[%c0_41, %c640] : memref<8x1280xf32, #tpu.memory_space<vmem>>, vector<8x128xf32>
    tpu.vector_store %arg4[%c0_41, %c640], %65 {strides = array<i32>} : memref<8x1280xf32, #tpu.memory_space<vmem>>, vector<8x128xf32>,
    %c0_42 = arith.constant 0 : index
    %c640_43 = arith.constant 640 : index
    %67 = vector.load %arg2[%c0_42, %c640_43] : memref<1x1152xf32, #tpu.memory_space<vmem>>, vector<1x128xf32>
    %68 = arith.negf %67 : vector<1x128xf32>
    %69 = math.exp %68 : vector<1x128xf32>
    %cst_44 = arith.constant 1.000000e+00 : f32
    %70 = vector.broadcast %cst_44 : f32 to vector<1x128xf32>
    %71 = arith.addf %70, %69 : vector<1x128xf32>
    %72 = arith.divf %70, %71 : vector<1x128xf32>
    %c0_45 = arith.constant 0 : index
    %c0_46 = arith.constant 0 : index
    %73 = vector.load %arg1[%c0_45, %c0_46] : memref<8x128xf32, #tpu.memory_space<vmem>>, vector<8x128xf32>
    %74 = vector.broadcast %72 : vector<1x128xf32> to vector<8x128xf32>
    %75 = arith.mulf %74, %73 : vector<8x128xf32>
    %c0_47 = arith.constant 0 : index
    %c640_48 = arith.constant 640 : index
    %76 = vector.load %arg3[%c0_47, %c640_48] : memref<1x1152xf32, #tpu.memory_space<vmem>>, vector<1x128xf32>
    %77 = vector.broadcast %76 : vector<1x128xf32> to vector<8x128xf32>
    %78 = arith.addf %75, %77 : vector<8x128xf32>
    %c0_49 = arith.constant 0 : index
    %c768 = arith.constant 768 : index
    %79 = vector.load %arg4[%c0_49, %c768] : memref<8x1280xf32, #tpu.memory_space<vmem>>, vector<8x128xf32>
    tpu.vector_store %arg4[%c0_49, %c768], %78 {strides = array<i32>} : memref<8x1280xf32, #tpu.memory_space<vmem>>, vector<8x128xf32>,
    %c0_50 = arith.constant 0 : index
    %c768_51 = arith.constant 768 : index
    %80 = vector.load %arg2[%c0_50, %c768_51] : memref<1x1152xf32, #tpu.memory_space<vmem>>, vector<1x128xf32>
    %81 = arith.negf %80 : vector<1x128xf32>
    %82 = math.exp %81 : vector<1x128xf32>
    %cst_52 = arith.constant 1.000000e+00 : f32
    %83 = vector.broadcast %cst_52 : f32 to vector<1x128xf32>
    %84 = arith.addf %83, %82 : vector<1x128xf32>
    %85 = arith.divf %83, %84 : vector<1x128xf32>
    %c0_53 = arith.constant 0 : index
    %c0_54 = arith.constant 0 : index
    %86 = vector.load %arg1[%c0_53, %c0_54] : memref<8x128xf32, #tpu.memory_space<vmem>>, vector<8x128xf32>
    %87 = vector.broadcast %85 : vector<1x128xf32> to vector<8x128xf32>
    %88 = arith.mulf %87, %86 : vector<8x128xf32>
    %c0_55 = arith.constant 0 : index
    %c768_56 = arith.constant 768 : index
    %89 = vector.load %arg3[%c0_55, %c768_56] : memref<1x1152xf32, #tpu.memory_space<vmem>>, vector<1x128xf32>
    %90 = vector.broadcast %89 : vector<1x128xf32> to vector<8x128xf32>
    %91 = arith.addf %88, %90 : vector<8x128xf32>
    %c0_57 = arith.constant 0 : index
    %c896 = arith.constant 896 : index
    %92 = vector.load %arg4[%c0_57, %c896] : memref<8x1280xf32, #tpu.memory_space<vmem>>, vector<8x128xf32>
    tpu.vector_store %arg4[%c0_57, %c896], %91 {strides = array<i32>} : memref<8x1280xf32, #tpu.memory_space<vmem>>, vector<8x128xf32>,
    %c0_58 = arith.constant 0 : index
    %c896_59 = arith.constant 896 : index
    %93 = vector.load %arg2[%c0_58, %c896_59] : memref<1x1152xf32, #tpu.memory_space<vmem>>, vector<1x128xf32>
    %94 = arith.negf %93 : vector<1x128xf32>
    %95 = math.exp %94 : vector<1x128xf32>
    %cst_60 = arith.constant 1.000000e+00 : f32
    %96 = vector.broadcast %cst_60 : f32 to vector<1x128xf32>
    %97 = arith.addf %96, %95 : vector<1x128xf32>
    %98 = arith.divf %96, %97 : vector<1x128xf32>
    %c0_61 = arith.constant 0 : index
    %c0_62 = arith.constant 0 : index
    %99 = vector.load %arg1[%c0_61, %c0_62] : memref<8x128xf32, #tpu.memory_space<vmem>>, vector<8x128xf32>
    %100 = vector.broadcast %98 : vector<1x128xf32> to vector<8x128xf32>
    %101 = arith.mulf %100, %99 : vector<8x128xf32>
    %c0_63 = arith.constant 0 : index
    %c896_64 = arith.constant 896 : index
    %102 = vector.load %arg3[%c0_63, %c896_64] : memref<1x1152xf32, #tpu.memory_space<vmem>>, vector<1x128xf32>
    %103 = vector.broadcast %102 : vector<1x128xf32> to vector<8x128xf32>
    %104 = arith.addf %101, %103 : vector<8x128xf32>
    %c0_65 = arith.constant 0 : index
    %c1024 = arith.constant 1024 : index
    %105 = vector.load %arg4[%c0_65, %c1024] : memref<8x1280xf32, #tpu.memory_space<vmem>>, vector<8x128xf32>
    tpu.vector_store %arg4[%c0_65, %c1024], %104 {strides = array<i32>} : memref<8x1280xf32, #tpu.memory_space<vmem>>, vector<8x128xf32>,
    %c0_66 = arith.constant 0 : index
    %c1024_67 = arith.constant 1024 : index
    %106 = vector.load %arg2[%c0_66, %c1024_67] : memref<1x1152xf32, #tpu.memory_space<vmem>>, vector<1x128xf32>
    %107 = arith.negf %106 : vector<1x128xf32>
    %108 = math.exp %107 : vector<1x128xf32>
    %cst_68 = arith.constant 1.000000e+00 : f32
    %109 = vector.broadcast %cst_68 : f32 to vector<1x128xf32>
    %110 = arith.addf %109, %108 : vector<1x128xf32>
    %111 = arith.divf %109, %110 : vector<1x128xf32>
    %c0_69 = arith.constant 0 : index
    %c0_70 = arith.constant 0 : index
    %112 = vector.load %arg1[%c0_69, %c0_70] : memref<8x128xf32, #tpu.memory_space<vmem>>, vector<8x128xf32>
    %113 = vector.broadcast %111 : vector<1x128xf32> to vector<8x128xf32>
    %114 = arith.mulf %113, %112 : vector<8x128xf32>
    %c0_71 = arith.constant 0 : index
    %c1024_72 = arith.constant 1024 : index
    %115 = vector.load %arg3[%c0_71, %c1024_72] : memref<1x1152xf32, #tpu.memory_space<vmem>>, vector<1x128xf32>
    %116 = vector.broadcast %115 : vector<1x128xf32> to vector<8x128xf32>
    %117 = arith.addf %114, %116 : vector<8x128xf32>
    %c0_73 = arith.constant 0 : index
    %c1152 = arith.constant 1152 : index
    %118 = vector.load %arg4[%c0_73, %c1152] : memref<8x1280xf32, #tpu.memory_space<vmem>>, vector<8x128xf32>
    tpu.vector_store %arg4[%c0_73, %c1152], %117 {strides = array<i32>} : memref<8x1280xf32, #tpu.memory_space<vmem>>, vector<8x128xf32>,
    return
  }
  func.func @transform_0(%arg0: i32) -> (i32, i32) {
    %c0_i32 = arith.constant 0 : i32
    %c0_i32_0 = arith.constant 0 : i32
    return %arg0, %c0_i32 : i32, i32
  }
  func.func @transform_1(%arg0: i32) -> (i32, i32) {
    %c0_i32 = arith.constant 0 : i32
    %c0_i32_0 = arith.constant 0 : i32
    %c0_i32_1 = arith.constant 0 : i32
    return %c0_i32, %c0_i32_0 : i32, i32
  }
  func.func @transform_2(%arg0: i32) -> (i32, i32) {
    %c0_i32 = arith.constant 0 : i32
    %c0_i32_0 = arith.constant 0 : i32
    %c0_i32_1 = arith.constant 0 : i32
    return %c0_i32, %c0_i32_0 : i32, i32
  }
  func.func @transform_3(%arg0: i32) -> (i32, i32) {
    %c0_i32 = arith.constant 0 : i32
    %c0_i32_0 = arith.constant 0 : i32
    return %arg0, %c0_i32 : i32, i32
  }
}

</mosaic_0001>

<llo_original>
// kernel: tpu_custom_call.1
$region0: #{tpu_custom_call.1}
  #allocation0 [shape = 'u32[]', space=smem, size = 0x4, offset = 0x4, fixed_abs, tag = 'smem constant byte address 0x4 - core index']
  #allocation1 [shape = 'u32[144,128]{1,0:T(1,128)}', space=vmem, size = 0x12000, scoped, tag = 'internal scratch']
  %s0 = inlined_call_operand.hbm [shape: f32[16,128], index: 0, kind: input, shape index: {}]
  %s1 = inlined_call_operand.hbm [shape: f32[1,1152], index: 1, kind: input, shape index: {}]
  %s2 = inlined_call_operand.hbm [shape: f32[1,1152], index: 2, kind: input, shape index: {}]
  %s3 = inlined_call_operand.hbm [shape: f32[16,1280], index: 3, kind: output, shape index: {}]
  %s4 = sld [smem:[#allocation0]]
  $region57: #{tpu_custom_call.1} parent=0
    _
  %s6 = ssub.s32 1, %s4
  %s7 = scalar_select 0, %s6, %s4
  $region1: #{tpu_custom_call.1} parent=0
    #allocation2 [shape = 'u8[8192]{0}', space=vmem, size = 0x2000, scoped, tag = 'input window, operand 0']
    #allocation3 [shape = 's32[2]{0}', space=sflag, size = 0x8, scoped, tag = 'scoped memory for tpu_custom_call.1']
    #allocation4 [shape = 's32[2]{0}', space=sflag, size = 0x8, scoped, tag = 'scoped memory for tpu_custom_call.1']
    #allocation5 [shape = 'u8[4608]{0}', space=vmem, size = 0x1400, scoped, tag = 'input window, operand 1, single buffered']
    #allocation6 [shape = 's32[1]{0}', space=sflag, size = 0x4, scoped, tag = 'scoped memory for tpu_custom_call.1']
    #allocation7 [shape = 'u8[4608]{0}', space=vmem, size = 0x1400, scoped, tag = 'input window, operand 2, single buffered']
    #allocation8 [shape = 'u8[81920]{0}', space=vmem, size = 0x14000, scoped, tag = 'output window, operand 0']
    %8 = vsyncpa [#allocation3], 0
    %s9 = scalar_lea.sflag [#allocation3], 1
    %10 = vsyncpa %s9, 0
    %11 = vsyncpa [#allocation6], 0
    %12 = vsyncpa [#allocation4], 0
    %s13 = scalar_lea.sflag [#allocation4], 1
    %14 = vsyncpa %s13, 0
    loop: start=0, step=1, limit=4
    $region2: #{tpu_custom_call.1} parent=1 // loop_pre_header
      _
    $region3: #{tpu_custom_call.1} parent=1 // loop_header
      %s16 = sphi 0, %s20
      %p17 = scmp.ge.s32.totalorder %s16, 4
      %s26 = sphi 0, %s28
      %s29 = sphi 0, %s26
      %s30 = sphi 0, %s29
      %s46 = sphi 0, %s30
      %s50 = sphi 0, %s50
      %s52 = sphi 0, %s50
      %s53 = sphi 0, %s52
      %s67 = sphi 0, %s53
      %s71 = sphi 0, %s71
      %s73 = sphi 0, %s71
      %s74 = sphi 0, %s73
      %s88 = sphi 0, %s74
      %s94 = sphi 0, %s96
      %s97 = sphi 0, %s94
      %s98 = sphi 0, %s97
      %s114 = sphi 0, %s98
    $region4: #{tpu_custom_call.1} parent=1 // loop_header_branch
      %19 = sbr.rel (%p17) target = $region8
    $region5: #{tpu_custom_call.1} parent=1 // loop_body
      %s21 = ssub.s32 %s16, 1
      %s22 = ssub.s32 %s16, 2
      %s23 = sadd.s32 %s16, 1
      %s24 = ssub.s32 %s16, %s23
      %p25 = scmp.eq.s32.totalorder %s24, 0
      %s27 = sadd.s32 %s26, 1
      %s28 = scalar_select %p25, %s26, %s27
      %p31 = pneg %p25
      %p32 = scmp.eq.s32.totalorder %s16, 1
      %p33 = por %p31, %p32
      %p34 = scmp.ne.s32.totalorder %s26, %s29
      %p35 = scmp.eq.s32.totalorder %s16, 0
      %p36 = por %p34, %p35
      %p37 = scmp.ne.s32.totalorder %s26, %s29
      %p38 = scmp.eq.s32.totalorder %s21, 1
      %p39 = por %p37, %p38
      %p40 = scmp.ne.s32.totalorder %s29, %s30
      %p41 = scmp.eq.s32.totalorder %s21, 0
      %p42 = por %p40, %p41
      %p43 = scmp.ne.s32.totalorder %s29, %s30
      %p44 = scmp.eq.s32.totalorder %s22, 1
      %p45 = por %p43, %p44
      %p47 = scmp.ne.s32.totalorder %s30, %s46
      %p48 = scmp.eq.s32.totalorder %s22, 0
      %p49 = por %p47, %p48
      %s51 = sadd.s32 %s50, 1
      %p54 = scmp.eq.s32.totalorder %s16, 1
      %p55 = scmp.ne.s32.totalorder %s50, %s52
      %p56 = scmp.eq.s32.totalorder %s16, 0
      %p57 = por %p55, %p56
      %p58 = scmp.ne.s32.totalorder %s50, %s52
      %p59 = scmp.eq.s32.totalorder %s21, 1
      %p60 = por %p58, %p59
      %p61 = scmp.ne.s32.totalorder %s52, %s53
      %p62 = scmp.eq.s32.totalorder %s21, 0
      %p63 = por %p61, %p62
      %p64 = scmp.ne.s32.totalorder %s52, %s53
      %p65 = scmp.eq.s32.totalorder %s22, 1
      %p66 = por %p64, %p65
      %p68 = scmp.ne.s32.totalorder %s53, %s67
      %p69 = scmp.eq.s32.totalorder %s22, 0
      %p70 = por %p68, %p69
      %s72 = sadd.s32 %s71, 1
      %p75 = scmp.eq.s32.totalorder %s16, 1
      %p76 = scmp.ne.s32.totalorder %s71, %s73
      %p77 = scmp.eq.s32.totalorder %s16, 0
      %p78 = por %p76, %p77
      %p79 = scmp.ne.s32.totalorder %s71, %s73
      %p80 = scmp.eq.s32.totalorder %s21, 1
      %p81 = por %p79, %p80
      %p82 = scmp.ne.s32.totalorder %s73, %s74
      %p83 = scmp.eq.s32.totalorder %s21, 0
      %p84 = por %p82, %p83
      %p85 = scmp.ne.s32.totalorder %s73, %s74
      %p86 = scmp.eq.s32.totalorder %s22, 1
      %p87 = por %p85, %p86
      %p89 = scmp.ne.s32.totalorder %s74, %s88
      %p90 = scmp.eq.s32.totalorder %s22, 0
      %p91 = por %p89, %p90
      %s92 = ssub.s32 %s16, %s23
      %p93 = scmp.eq.s32.totalorder %s92, 0
      %s95 = sadd.s32 %s94, 1
      %s96 = scalar_select %p93, %s94, %s95
      %p99 = pneg %p93
      %p100 = scmp.eq.s32.totalorder %s16, 1
      %p101 = por %p99, %p100
      %p102 = scmp.ne.s32.totalorder %s94, %s97
      %p103 = scmp.eq.s32.totalorder %s16, 0
      %p104 = por %p102, %p103
      %p105 = scmp.ne.s32.totalorder %s94, %s97
      %p106 = scmp.eq.s32.totalorder %s21, 1
      %p107 = por %p105, %p106
      %p108 = scmp.ne.s32.totalorder %s97, %s98
      %p109 = scmp.eq.s32.totalorder %s21, 0
      %p110 = por %p108, %p109
      %p111 = scmp.ne.s32.totalorder %s97, %s98
      %p112 = scmp.eq.s32.totalorder %s22, 1
      %p113 = por %p111, %p112
      %p115 = scmp.ne.s32.totalorder %s98, %s114
      %p116 = scmp.eq.s32.totalorder %s22, 0
      %p117 = por %p115, %p116
      %p118 = scmp.le.s32.totalorder 1, %s16
      %p119 = scmp.lt.s32.totalorder %s16, 3
      %p120 = pnand %p118, %p119
      %p121 = pneg %p120
      // Predicated region
      $region9: #{tpu_custom_call.1} parent=5 // pred_check
        _
      $region10: #{tpu_custom_call.1} parent=5 // pred_check_branch
        %123 = sbr.rel (%p120) target = $region12
      $region11: #{tpu_custom_call.1} parent=5 // pred_region
        %s124 = ssub.s32 %s16, 1
        // Predicated region
        $region13: #{tpu_custom_call.1} parent=11 // pred_check
          %p125 = pneg %p63
        $region14: #{tpu_custom_call.1} parent=11 // pred_check_branch
          %127 = sbr.rel (%p125) target = $region16
        $region15: #{tpu_custom_call.1} parent=11 // pred_region
          %s129 = ssub.s32 144, 144
          %130 = vsyncadd [#allocation6], %s129
          %s132 = sshll.u32 [#allocation5], 4
          %s133 = int_to_ptr.vmem [resolvable:$true] %s132
          %135 = dma.hbm_to_vmem [thread:$0]  %s1, 144, %s133, [#allocation6]
        $region16: #{tpu_custom_call.1} parent=11 // pred_fallthru
          _
        // Predicated region
        $region17: #{tpu_custom_call.1} parent=11 // pred_check
          %p136 = pneg %p84
        $region18: #{tpu_custom_call.1} parent=11 // pred_check_branch
          %138 = sbr.rel (%p136) target = $region20
        $region19: #{tpu_custom_call.1} parent=11 // pred_region
          %s140 = ssub.s32 144, 144
          %141 = vsyncadd [#allocation6], %s140
          %s143 = sshll.u32 [#allocation7], 4
          %s144 = int_to_ptr.vmem [resolvable:$true] %s143
          %146 = dma.hbm_to_vmem [thread:$0]  %s2, 144, %s144, [#allocation6]
        $region20: #{tpu_custom_call.1} parent=11 // pred_fallthru
          _
      $region12: #{tpu_custom_call.1} parent=5 // pred_fallthru
        _
      %p147 = scmp.lt.s32.totalorder %s16, 2
      // Predicated region
      $region21: #{tpu_custom_call.1} parent=5 // pred_check
        %p148 = pneg %p147
      $region22: #{tpu_custom_call.1} parent=5 // pred_check_branch
        %150 = sbr.rel (%p148) target = $region24
      $region23: #{tpu_custom_call.1} parent=5 // pred_region
        // Predicated region
        $region25: #{tpu_custom_call.1} parent=23 // pred_check
          %p151 = pneg %p36
        $region26: #{tpu_custom_call.1} parent=23 // pred_check_branch
          %153 = sbr.rel (%p151) target = $region28
        $region27: #{tpu_custom_call.1} parent=23 // pred_region
          %s154 = sand.u32 %s26, 1
          %s155 = scalar_lea.sflag [#allocation3], %s154
          %s156 = sand.u32 %s26, 1
          %s157 = smul.addr %s156, 8
          %s158 = scalar_lea.vmem [#allocation2], %s157
          %s160 = ssub.s32 128, 128
          %161 = vsyncadd %s155, %s160
          %s162 = smul.addr %s16, 128
          %s163 = scalar_lea.hbm %s0, %s162
          %s165 = sshll.u32 %s158, 4
          %s166 = int_to_ptr.vmem [resolvable:$true] %s165
          %168 = dma.hbm_to_vmem [thread:$0]  %s163, 128, %s166, %s155
        $region28: #{tpu_custom_call.1} parent=23 // pred_fallthru
          _
      $region24: #{tpu_custom_call.1} parent=5 // pred_fallthru
        _
      %p169 = scmp.le.s32.totalorder 1, %s16
      %p170 = scmp.lt.s32.totalorder %s16, 3
      %p171 = pnand %p169, %p170
      %p172 = pneg %p171
      // Predicated region
      $region29: #{tpu_custom_call.1} parent=5 // pred_check
        _
      $region30: #{tpu_custom_call.1} parent=5 // pred_check_branch
        %174 = sbr.rel (%p171) target = $region32
      $region31: #{tpu_custom_call.1} parent=5 // pred_region
        %s175 = ssub.s32 %s16, 1
        %s176 = sand.u32 %s29, 1
        %s177 = scalar_lea.sflag [#allocation3], %s176
        %s178 = sand.u32 %s29, 1
        %s179 = smul.addr %s178, 8
        %s180 = scalar_lea.vmem [#allocation2], %s179
        // Predicated region
        $region33: #{tpu_custom_call.1} parent=31 // pred_check
          %p181 = pneg %p42
        $region34: #{tpu_custom_call.1} parent=31 // pred_check_branch
          %183 = sbr.rel (%p181) target = $region36
        $region35: #{tpu_custom_call.1} parent=31 // pred_region
          %184 = dma.done %s177, 128
        $region36: #{tpu_custom_call.1} parent=31 // pred_fallthru
          _
        // Predicated region
        $region37: #{tpu_custom_call.1} parent=31 // pred_check
          %p185 = pneg %p63
        $region38: #{tpu_custom_call.1} parent=31 // pred_check_branch
          %187 = sbr.rel (%p185) target = $region40
        $region39: #{tpu_custom_call.1} parent=31 // pred_region
          %188 = dma.done [#allocation6], 144
        $region40: #{tpu_custom_call.1} parent=31 // pred_fallthru
          _
        // Predicated region
        $region41: #{tpu_custom_call.1} parent=31 // pred_check
          %p189 = pneg %p84
        $region42: #{tpu_custom_call.1} parent=31 // pred_check_branch
          %191 = sbr.rel (%p189) target = $region44
        $region43: #{tpu_custom_call.1} parent=31 // pred_region
          %192 = dma.done [#allocation6], 144
        $region44: #{tpu_custom_call.1} parent=31 // pred_fallthru
          _
        %s193 = sand.u32 %s29, 1
        %s194 = scalar_lea.sflag [#allocation3], %s193
        %s195 = sand.u32 %s29, 1
        %s196 = smul.addr %s195, 8
        %s197 = scalar_lea.vmem [#allocation2], %s196
        %p198 = pneg %p42
        %p199 = pneg %p39
        %p200 = pneg %p63
        %p201 = pneg %p60
        %p202 = pneg %p84
        %p203 = pneg %p81
        %p204 = pneg %p110
        %p205 = pneg %p107
        %s206 = sand.u32 %s97, 1
        %s207 = scalar_lea.sflag [#allocation4], %s206
        %s208 = sand.u32 %s97, 1
        %s209 = smul.addr %s208, 80
        %s210 = scalar_lea.vmem [#allocation8], %s209
        %v211 = vld [vmem:[%s180] sm:$0xff]
        %212 = vst [vmem:[%s210] sm:$0xff] %v211
        %v213 = vld [vmem:[#allocation5] sm:$0x1]
        %v214 = vxor.u32 %v213, 2147483648
        %v215 = vmul.f32 %v214, 1.442695
        %v216 = vpow.pop %v215
        %v217 = vadd.f32 %v216, 1.0
        %v218 = vrcp.pop %v217
        %v219 = vmul.f32 1.0, %v218
        %v220 = vld [vmem:[%s180] sm:$0xff]
        %v222 = vlaneseq
        %v223 = vshrl.u32 %v222, 7
        %v224 = vsub.s32 0, %v223
        %v225 = vrot.slane %v219, %v224
        %v227 = vmul.f32 %v225, %v220
        %v228 = vld [vmem:[#allocation7] sm:$0x1]
        %v230 = vlaneseq
        %v231 = vshrl.u32 %v230, 7
        %v232 = vsub.s32 0, %v231
        %v233 = vrot.slane %v228, %v232
        %v235 = vadd.f32 %v227, %v233
        %236 = vst [vmem:[%s210 + $0x8] sm:$0xff] %v235
        %v237 = vld [vmem:[#allocation5 + $0x1] sm:$0x1]
        %v238 = vxor.u32 %v237, 2147483648
        %v239 = vmul.f32 %v238, 1.442695
        %v240 = vpow.pop %v239
        %v241 = vadd.f32 %v240, 1.0
        %v242 = vrcp.pop %v241
        %v243 = vmul.f32 1.0, %v242
        %v244 = vld [vmem:[%s180] sm:$0xff]
        %v246 = vlaneseq
        %v247 = vshrl.u32 %v246, 7
        %v248 = vsub.s32 0, %v247
        %v249 = vrot.slane %v243, %v248
        %v251 = vmul.f32 %v249, %v244
        %v252 = vld [vmem:[#allocation7 + $0x1] sm:$0x1]
        %v254 = vlaneseq
        %v255 = vshrl.u32 %v254, 7
        %v256 = vsub.s32 0, %v255
        %v257 = vrot.slane %v252, %v256
        %v259 = vadd.f32 %v251, %v257
        %260 = vst [vmem:[%s210 + $0x10] sm:$0xff] %v259
        %v261 = vld [vmem:[#allocation5 + $0x2] sm:$0x1]
        %v262 = vxor.u32 %v261, 2147483648
        %v263 = vmul.f32 %v262, 1.442695
        %v264 = vpow.pop %v263
        %v265 = vadd.f32 %v264, 1.0
        %v266 = vrcp.pop %v265
        %v267 = vmul.f32 1.0, %v266
        %v268 = vld [vmem:[%s180] sm:$0xff]
        %v270 = vlaneseq
        %v271 = vshrl.u32 %v270, 7
        %v272 = vsub.s32 0, %v271
        %v273 = vrot.slane %v267, %v272
        %v275 = vmul.f32 %v273, %v268
        %v276 = vld [vmem:[#allocation7 + $0x2] sm:$0x1]
        %v278 = vlaneseq
        %v279 = vshrl.u32 %v278, 7
        %v280 = vsub.s32 0, %v279
        %v281 = vrot.slane %v276, %v280
        %v283 = vadd.f32 %v275, %v281
        %284 = vst [vmem:[%s210 + $0x18] sm:$0xff] %v283
        %v285 = vld [vmem:[#allocation5 + $0x3] sm:$0x1]
        %v286 = vxor.u32 %v285, 2147483648
        %v287 = vmul.f32 %v286, 1.442695
        %v288 = vpow.pop %v287
        %v289 = vadd.f32 %v288, 1.0
        %v290 = vrcp.pop %v289
        %v291 = vmul.f32 1.0, %v290
        %v292 = vld [vmem:[%s180] sm:$0xff]
        %v294 = vlaneseq
        %v295 = vshrl.u32 %v294, 7
        %v296 = vsub.s32 0, %v295
        %v297 = vrot.slane %v291, %v296
        %v299 = vmul.f32 %v297, %v292
        %v300 = vld [vmem:[#allocation7 + $0x3] sm:$0x1]
        %v302 = vlaneseq
        %v303 = vshrl.u32 %v302, 7
        %v304 = vsub.s32 0, %v303
        %v305 = vrot.slane %v300, %v304
        %v307 = vadd.f32 %v299, %v305
        %308 = vst [vmem:[%s210 + $0x20] sm:$0xff] %v307
        %v309 = vld [vmem:[#allocation5 + $0x4] sm:$0x1]
        %v310 = vxor.u32 %v309, 2147483648
        %v311 = vmul.f32 %v310, 1.442695
        %v312 = vpow.pop %v311
        %v313 = vadd.f32 %v312, 1.0
        %v314 = vrcp.pop %v313
        %v315 = vmul.f32 1.0, %v314
        %v316 = vld [vmem:[%s180] sm:$0xff]
        %v318 = vlaneseq
        %v319 = vshrl.u32 %v318, 7
        %v320 = vsub.s32 0, %v319
        %v321 = vrot.slane %v315, %v320
        %v323 = vmul.f32 %v321, %v316
        %v324 = vld [vmem:[#allocation7 + $0x4] sm:$0x1]
        %v326 = vlaneseq
        %v327 = vshrl.u32 %v326, 7
        %v328 = vsub.s32 0, %v327
        %v329 = vrot.slane %v324, %v328
        %v331 = vadd.f32 %v323, %v329
        %332 = vst [vmem:[%s210 + $0x28] sm:$0xff] %v331
        %v333 = vld [vmem:[#allocation5 + $0x5] sm:$0x1]
        %v334 = vxor.u32 %v333, 2147483648
        %v335 = vmul.f32 %v334, 1.442695
        %v336 = vpow.pop %v335
        %v337 = vadd.f32 %v336, 1.0
        %v338 = vrcp.pop %v337
        %v339 = vmul.f32 1.0, %v338
        %v340 = vld [vmem:[%s180] sm:$0xff]
        %v342 = vlaneseq
        %v343 = vshrl.u32 %v342, 7
        %v344 = vsub.s32 0, %v343
        %v345 = vrot.slane %v339, %v344
        %v347 = vmul.f32 %v345, %v340
        %v348 = vld [vmem:[#allocation7 + $0x5] sm:$0x1]
        %v350 = vlaneseq
        %v351 = vshrl.u32 %v350, 7
        %v352 = vsub.s32 0, %v351
        %v353 = vrot.slane %v348, %v352
        %v355 = vadd.f32 %v347, %v353
        %356 = vst [vmem:[%s210 + $0x30] sm:$0xff] %v355
        %v357 = vld [vmem:[#allocation5 + $0x6] sm:$0x1]
        %v358 = vxor.u32 %v357, 2147483648
        %v359 = vmul.f32 %v358, 1.442695
        %v360 = vpow.pop %v359
        %v361 = vadd.f32 %v360, 1.0
        %v362 = vrcp.pop %v361
        %v363 = vmul.f32 1.0, %v362
        %v364 = vld [vmem:[%s180] sm:$0xff]
        %v366 = vlaneseq
        %v367 = vshrl.u32 %v366, 7
        %v368 = vsub.s32 0, %v367
        %v369 = vrot.slane %v363, %v368
        %v371 = vmul.f32 %v369, %v364
        %v372 = vld [vmem:[#allocation7 + $0x6] sm:$0x1]
        %v374 = vlaneseq
        %v375 = vshrl.u32 %v374, 7
        %v376 = vsub.s32 0, %v375
        %v377 = vrot.slane %v372, %v376
        %v379 = vadd.f32 %v371, %v377
        %380 = vst [vmem:[%s210 + $0x38] sm:$0xff] %v379
        %v381 = vld [vmem:[#allocation5 + $0x7] sm:$0x1]
        %v382 = vxor.u32 %v381, 2147483648
        %v383 = vmul.f32 %v382, 1.442695
        %v384 = vpow.pop %v383
        %v385 = vadd.f32 %v384, 1.0
        %v386 = vrcp.pop %v385
        %v387 = vmul.f32 1.0, %v386
        %v388 = vld [vmem:[%s180] sm:$0xff]
        %v390 = vlaneseq
        %v391 = vshrl.u32 %v390, 7
        %v392 = vsub.s32 0, %v391
        %v393 = vrot.slane %v387, %v392
        %v395 = vmul.f32 %v393, %v388
        %v396 = vld [vmem:[#allocation7 + $0x7] sm:$0x1]
        %v398 = vlaneseq
        %v399 = vshrl.u32 %v398, 7
        %v400 = vsub.s32 0, %v399
        %v401 = vrot.slane %v396, %v400
        %v403 = vadd.f32 %v395, %v401
        %404 = vst [vmem:[%s210 + $0x40] sm:$0xff] %v403
        %v405 = vld [vmem:[#allocation5 + $0x8] sm:$0x1]
        %v406 = vxor.u32 %v405, 2147483648
        %v407 = vmul.f32 %v406, 1.442695
        %v408 = vpow.pop %v407
        %v409 = vadd.f32 %v408, 1.0
        %v410 = vrcp.pop %v409
        %v411 = vmul.f32 1.0, %v410
        %v412 = vld [vmem:[%s180] sm:$0xff]
        %v414 = vlaneseq
        %v415 = vshrl.u32 %v414, 7
        %v416 = vsub.s32 0, %v415
        %v417 = vrot.slane %v411, %v416
        %v419 = vmul.f32 %v417, %v412
        %v420 = vld [vmem:[#allocation7 + $0x8] sm:$0x1]
        %v422 = vlaneseq
        %v423 = vshrl.u32 %v422, 7
        %v424 = vsub.s32 0, %v423
        %v425 = vrot.slane %v420, %v424
        %v427 = vadd.f32 %v419, %v425
        %428 = vst [vmem:[%s210 + $0x48] sm:$0xff] %v427
        %s429 = sand.u32 %s97, 1
        %s430 = scalar_lea.sflag [#allocation4], %s429
        %s431 = sand.u32 %s97, 1
        %s432 = smul.addr %s431, 80
        %s433 = scalar_lea.vmem [#allocation8], %s432
        // Predicated region
        $region45: #{tpu_custom_call.1} parent=31 // pred_check
          %p434 = pneg %p107
        $region46: #{tpu_custom_call.1} parent=31 // pred_check_branch
          %436 = sbr.rel (%p434) target = $region48
        $region47: #{tpu_custom_call.1} parent=31 // pred_region
          %s438 = ssub.s32 1280, 1280
          %439 = vsyncadd %s430, %s438
          %s440 = smul.addr %s21, 10
          %s441 = smul.addr %s440, 128
          %s442 = scalar_lea.hbm %s3, %s441
          %s444 = sshll.u32 %s433, 4
          %s445 = int_to_ptr.vmem [resolvable:$true] %s444
          %447 = dma.vmem_to_hbm [thread:$0]  %s445, 1280, %s442, %s430
        $region48: #{tpu_custom_call.1} parent=31 // pred_fallthru
          _
      $region32: #{tpu_custom_call.1} parent=5 // pred_fallthru
        _
      %p448 = scmp.le.s32.totalorder 2, %s16
      // Predicated region
      $region49: #{tpu_custom_call.1} parent=5 // pred_check
        %p449 = pneg %p448
      $region50: #{tpu_custom_call.1} parent=5 // pred_check_branch
        %451 = sbr.rel (%p449) target = $region52
      $region51: #{tpu_custom_call.1} parent=5 // pred_region
        %s452 = ssub.s32 %s16, 2
        // Predicated region
        $region53: #{tpu_custom_call.1} parent=51 // pred_check
          %p453 = pneg %p113
        $region54: #{tpu_custom_call.1} parent=51 // pred_check_branch
          %455 = sbr.rel (%p453) target = $region56
        $region55: #{tpu_custom_call.1} parent=51 // pred_region
          %s456 = sand.u32 %s98, 1
          %s457 = scalar_lea.sflag [#allocation4], %s456
          %s458 = sand.u32 %s98, 1
          %s459 = smul.addr %s458, 80
          %s460 = scalar_lea.vmem [#allocation8], %s459
          %461 = dma.done %s457, 1280
        $region56: #{tpu_custom_call.1} parent=51 // pred_fallthru
          _
      $region52: #{tpu_custom_call.1} parent=5 // pred_fallthru
        _
    $region6: #{tpu_custom_call.1} parent=1 // loop_footer
      %s20 = sadd.s32 1, %s16
    $region7: #{tpu_custom_call.1} parent=1 // loop_footer_branch
      %15 = sbr.rel target = $region3
    $region8: #{tpu_custom_call.1} parent=1 // loop_exit
      _
    %462 = vsyncpa [#allocation3], 1
    %s463 = scalar_lea.sflag [#allocation3], 1
    %464 = vsyncpa %s463, 1
    %465 = vsyncpa [#allocation6], 1
    %466 = vsyncpa [#allocation4], 1
    %s467 = scalar_lea.sflag [#allocation4], 1
    %468 = vsyncpa %s467, 1

</llo_original>
